<compile_context>
chip_gen: v7x
topology: tpu7x:2x2x1
jax: 0.10.0
libtpu: 0.0.40
codegen_flags: <defaults>
</compile_context>

<pallas_src>
import functools
import math

import numpy as np

import jax
import jax.numpy as jnp
from jax import lax
from jax.experimental import pallas as pl
from jax.experimental.pallas import tpu as pltpu

_LANE = 128          # lanes per vreg
_SUB = 8             # sublanes per vreg
_MAX_BLOCK_ROWS = 1024   # (1024, 128) f32 = 512 KiB per input per buffer


def _round_up(x, m):
    return ((x + m - 1) // m) * m


def _loss_sums_kernel(o_ref, t_ref, acc_ref, *, beta, gamma,
                      num_valid, block_rows, blocks_per_core):
    """Accumulates three global partial sums into the resident output block.

    acc_ref: (3, 8, 128) f32 output block, resident in VMEM across the j axis.
      slot 0: sum of   t * -(beta ** ((1 - o) ** gamma)) * log(o)
      slot 1: sum of   (t - 1) * (beta ** (o ** gamma)) * log(1 - o)
      slot 2: count of nonzero targets
    """
    c = pl.program_id(0)
    j = pl.program_id(1)

    @pl.when(j == 0)
    def _():
        acc_ref[...] = jnp.zeros_like(acc_ref)

    # Nominal (unclamped) global element offset of this block.  Blocks whose nominal
    # offset lies past the end of the data were clamped by the index_map (they re-read
    # the last real block) and are fully masked out here.
    block_idx = c * blocks_per_core + j
    start = block_idx * (block_rows * _LANE)
    row_ids = lax.broadcasted_iota(jnp.int32, (block_rows, _LANE), 0)
    col_ids = lax.broadcasted_iota(jnp.int32, (block_rows, _LANE), 1)
    gidx = start + row_ids * _LANE + col_ids
    valid = gidx < num_valid
    maskf = valid.astype(jnp.float32)

    # Force invalid lanes to safe values (handles unspecified out-of-bounds block tails,
    # including possible NaN garbage) before any transcendental.
    o = jnp.where(valid, o_ref[...].astype(jnp.float32), 0.5)
    t = jnp.where(valid, t_ref[...].astype(jnp.float32), 0.0)
    o = jnp.clip(o, 1e-6, 1.0 - 1e-6)

    # Hoisted logs, reused by both the pow terms and the loss terms.
    log_o = jnp.log(o)
    log_1mo = jnp.log(1.0 - o)
    ln_beta = jnp.float32(math.log(beta))
    if gamma == 0.5:
        # gamma == 0.5 fast path: sqrt instead of exp(gamma * log(x)).
        p_b = jnp.sqrt(1.0 - o)
        p_nb = jnp.sqrt(o)
    else:
        p_b = jnp.exp(jnp.float32(gamma) * log_1mo)
        p_nb = jnp.exp(jnp.float32(gamma) * log_o)
    pow_b = jnp.exp(p_b * ln_beta)     # beta ** ((1 - o) ** gamma)
    pow_nb = jnp.exp(p_nb * ln_beta)   # beta ** (o ** gamma)

    boundary = t * (-pow_b) * log_o                  # invalid: t == 0        -> 0
    non_boundary = (t - maskf) * pow_nb * log_1mo    # invalid: (0 - 0)       -> 0
    count = (t != 0.0).astype(jnp.float32)           # invalid: t == 0        -> 0

    def fold(x):
        # (block_rows, 128) -> (8, 128): layout-preserving reshape + pure VALU vreg adds.
        return jnp.sum(x.reshape(block_rows // _SUB, _SUB, _LANE), axis=0)

    acc_ref[0] += fold(boundary)
    acc_ref[1] += fold(non_boundary)
    acc_ref[2] += fold(count)


def class_balanced_ce_attention_loss(outputs, targets, *, beta=4.0, gamma=0.5):
    """JAX/Pallas equivalent of ClassBalancedCrossEntropyAttentionLoss.forward.

    outputs, targets: NCHW arrays. `outputs` must already be sigmoided (values in (0, 1)),
    matching the PyTorch module's contract.
    """
    assert outputs.shape == targets.shape and outputs.ndim == 4
    batch = outputs.shape[0]
    num_total = int(np.prod(outputs.shape))

    # Flatten to a lane-dense (rows, 128) view.  Pad (< 128 elements) only when needed.
    pad = (-num_total) % _LANE
    o_flat = outputs.reshape(-1)
    t_flat = targets.reshape(-1)
    if pad:
        o_flat = jnp.pad(o_flat, (0, pad), constant_values=0.5)
        t_flat = jnp.pad(t_flat, (0, pad), constant_values=0.0)
    rows = (num_total + pad) // _LANE
    o2 = o_flat.reshape(rows, _LANE)
    t2 = t_flat.reshape(rows, _LANE)

    block_rows = min(_MAX_BLOCK_ROWS, _round_up(rows, _SUB))
    blocks_total = pl.cdiv(rows, block_rows)
    ncores = 2 if blocks_total >= 2 else 1         # leading axis split across TCs on v7x
    blocks_per_core = pl.cdiv(blocks_total, ncores)

    def in_map(c, j):
        b = c * blocks_per_core + j
        # Clamp so the block start always lies inside the array; clamped (duplicate)
        # blocks are fully masked out in-kernel via the global-index mask.
        return (jnp.minimum(b, blocks_total - 1), 0)

    in_spec = pl.BlockSpec((block_rows, _LANE), in_map)
    out_spec = pl.BlockSpec((None, 3, _SUB, _LANE), lambda c, j: (c, 0, 0, 0))

    partials = pl.pallas_call(
        functools.partial(
            _loss_sums_kernel,
            beta=float(beta), gamma=float(gamma),
            num_valid=num_total,
            block_rows=block_rows,
            blocks_per_core=blocks_per_core),
        out_shape=jax.ShapeDtypeStruct((ncores, 3, _SUB, _LANE), jnp.float32),
        grid=(ncores, blocks_per_core),
        in_specs=[in_spec, in_spec],
        out_specs=out_spec,
        compiler_params=pltpu.CompilerParams(
            dimension_semantics=("parallel", "arbitrary")),
    )(o2, t2)

    sums = jnp.sum(partials, axis=(0, 2, 3))   # (3,) tiny cross-lane reduce done in XLA
    s_boundary, s_non_boundary, num_boundary = sums[0], sums[1], sums[2]

    alpha = (jnp.float32(num_total) - num_boundary) / jnp.float32(num_total)
    loss = alpha * s_boundary + (1.0 - alpha) * s_non_boundary
    return loss / jnp.float32(batch)
    # TODO(synk): the PyTorch module's host-side NaN check + pdb.set_trace has no kernel
    # equivalent and is intentionally omitted.


def _reference_loss(outputs, targets, *, beta=4.0, gamma=0.5):
    """Plain-JAX reference replicating the PyTorch forward exactly."""
    o = jnp.clip(outputs.astype(jnp.float32), 1e-6, 1.0 - 1e-6)
    t = targets.astype(jnp.float32)
    num_total = float(np.prod(targets.shape))
    num_boundary = jnp.sum((t != 0.0).astype(jnp.float32))
    alpha = (num_total - num_boundary) / num_total
    boundary = t * -alpha * beta ** (1.0 - o) ** gamma * jnp.log(o)
    non_boundary = (t - 1.0) * (1.0 - alpha) * beta ** o ** gamma * jnp.log(1.0 - o)
    return jnp.sum(boundary + non_boundary) / outputs.shape[0]


if __name__ == "__main__":
    key = jax.random.PRNGKey(0)
    k_out, k_tgt = jax.random.split(key)

    # Small NCHW shapes: batch=2, channels=4, spatial=16x16.
    shape = (2, 4, 16, 16)
    outputs = jax.random.uniform(k_out, shape, jnp.float32, minval=0.01, maxval=0.99)
    targets = (jax.random.uniform(k_tgt, shape, jnp.float32) < 0.15).astype(jnp.float32)

    loss = class_balanced_ce_attention_loss(outputs, targets, beta=4.0, gamma=0.5)
    loss = jax.block_until_ready(loss)

    ref = jax.block_until_ready(_reference_loss(outputs, targets, beta=4.0, gamma=0.5))
    np.testing.assert_allclose(np.asarray(loss), np.asarray(ref), rtol=1e-4, atol=1e-4)

    print("KERNEL_OK")
</pallas_src>

<mosaic_0001>
module attributes {stable_mosaic.version = 11 : i64} {
  func.func @_loss_sums_kernel(%arg0: i32, %arg1: i32, %arg2: memref<16x128xf32, #tpu.memory_space<vmem>>, %arg3: memref<16x128xf32, #tpu.memory_space<vmem>>, %arg4: memref<1x3x8x128xf32, #tpu.memory_space<vmem>>) attributes {dimension_semantics = [#tpu.dimension_semantics<parallel>, #tpu.dimension_semantics<arbitrary>], iteration_bounds = array<i64: 1, 1>, scalar_prefetch = 0 : i64, scratch_operands = 0 : i64, tpu.core_type = #tpu.core_type<tc>, window_params = [{transform_indices = @transform_0, window_bounds = array<i64: 16, 128>}, {transform_indices = @transform_1, window_bounds = array<i64: 16, 128>}, {transform_indices = @transform_2, window_bounds = array<i64: 1, 3, 8, 128>}]} {
    %c0_i32 = arith.constant 0 : i32
    %0 = arith.cmpi eq, %arg1, %c0_i32 : i32
    %1 = arith.extui %0 : i1 to i32
    %c0_i32_0 = arith.constant 0 : i32
    %2 = arith.cmpi ne, %1, %c0_i32_0 : i32
    scf.if %2 {
      %cst_39 = arith.constant 0.000000e+00 : f32
      %76 = vector.broadcast %cst_39 : f32 to vector<3x8x128xf32>
      %c0_40 = arith.constant 0 : index
      %c0_41 = arith.constant 0 : index
      %c0_42 = arith.constant 0 : index
      %c0_43 = arith.constant 0 : index
      %77 = vector.load %arg4[%c0_40, %c0_41, %c0_42, %c0_43] : memref<1x3x8x128xf32, #tpu.memory_space<vmem>>, vector<1x3x8x128xf32>
      %78 = vector.shape_cast %77 : vector<1x3x8x128xf32> to vector<3x8x128xf32>
      %79 = vector.shape_cast %76 : vector<3x8x128xf32> to vector<1x3x8x128xf32>
      tpu.vector_store %arg4[%c0_40, %c0_41, %c0_42, %c0_43], %79 {strides = array<i32>} : memref<1x3x8x128xf32, #tpu.memory_space<vmem>>, vector<1x3x8x128xf32>,
    } else {
    }
    %c1_i32 = arith.constant 1 : i32
    %3 = arith.muli %arg0, %c1_i32 : i32
    %4 = arith.addi %3, %arg1 : i32
    %c2048_i32 = arith.constant 2048 : i32
    %5 = arith.muli %4, %c2048_i32 : i32
    %6 = tpu.iota {dimensions = array<i32: 0>} : vector<16x128xi32>
    %7 = tpu.iota {dimensions = array<i32: 1>} : vector<16x128xi32>
    %c128_i32 = arith.constant 128 : i32
    %8 = vector.broadcast %c128_i32 : i32 to vector<16x128xi32>
    %9 = arith.muli %6, %8 : vector<16x128xi32>
    %10 = vector.broadcast %5 : i32 to vector<16x128xi32>
    %11 = arith.addi %10, %9 : vector<16x128xi32>
    %12 = arith.addi %11, %7 : vector<16x128xi32>
    %c2048_i32_1 = arith.constant 2048 : i32
    %13 = vector.broadcast %c2048_i32_1 : i32 to vector<16x128xi32>
    %14 = arith.cmpi slt, %12, %13 : vector<16x128xi32>
    %15 = arith.extui %14 : vector<16x128xi1> to vector<16x128xi32>
    %16 = arith.sitofp %15 : vector<16x128xi32> to vector<16x128xf32>
    %c0 = arith.constant 0 : index
    %c0_2 = arith.constant 0 : index
    %17 = vector.load %arg2[%c0, %c0_2] : memref<16x128xf32, #tpu.memory_space<vmem>>, vector<16x128xf32>
    %cst = arith.constant 5.000000e-01 : f32
    %18 = vector.broadcast %cst : f32 to vector<16x128xf32>
    %19 = arith.select %14, %17, %18 : vector<16x128xi1>, vector<16x128xf32>
    %c0_3 = arith.constant 0 : index
    %c0_4 = arith.constant 0 : index
    %20 = vector.load %arg3[%c0_3, %c0_4] : memref<16x128xf32, #tpu.memory_space<vmem>>, vector<16x128xf32>
    %cst_5 = arith.constant 0.000000e+00 : f32
    %21 = vector.broadcast %cst_5 : f32 to vector<16x128xf32>
    %22 = arith.select %14, %20, %21 : vector<16x128xi1>, vector<16x128xf32>
    %cst_6 = arith.constant 9.99999997E-7 : f32
    %cst_7 = arith.constant 0.999998986 : f32
    %23 = vector.broadcast %cst_6 : f32 to vector<16x128xf32>
    %24 = arith.maximumf %23, %19 : vector<16x128xf32>
    %25 = vector.broadcast %cst_7 : f32 to vector<16x128xf32>
    %26 = arith.minimumf %25, %24 : vector<16x128xf32>
    %27 = math.log %26 : vector<16x128xf32>
    %cst_8 = arith.constant 1.000000e+00 : f32
    %28 = vector.broadcast %cst_8 : f32 to vector<16x128xf32>
    %29 = arith.subf %28, %26 : vector<16x128xf32>
    %30 = math.log %29 : vector<16x128xf32>
    %cst_9 = arith.constant 1.000000e+00 : f32
    %31 = vector.broadcast %cst_9 : f32 to vector<16x128xf32>
    %32 = arith.subf %31, %26 : vector<16x128xf32>
    %33 = math.sqrt %32 : vector<16x128xf32>
    %34 = math.sqrt %26 : vector<16x128xf32>
    %cst_10 = arith.constant 1.38629436 : f32
    %35 = vector.broadcast %cst_10 : f32 to vector<16x128xf32>
    %36 = arith.mulf %33, %35 : vector<16x128xf32>
    %37 = math.exp %36 : vector<16x128xf32>
    %cst_11 = arith.constant 1.38629436 : f32
    %38 = vector.broadcast %cst_11 : f32 to vector<16x128xf32>
    %39 = arith.mulf %34, %38 : vector<16x128xf32>
    %40 = math.exp %39 : vector<16x128xf32>
    %cst_12 = arith.constant 0.000000e+00 : f32
    %41 = vector.broadcast %cst_12 : f32 to vector<16x128xf32>
    %42 = arith.subf %41, %37 : vector<16x128xf32>
    %43 = arith.mulf %22, %42 : vector<16x128xf32>
    %44 = arith.mulf %43, %27 : vector<16x128xf32>
    %45 = arith.subf %22, %16 : vector<16x128xf32>
    %46 = arith.mulf %45, %40 : vector<16x128xf32>
    %47 = arith.mulf %46, %30 : vector<16x128xf32>
    %cst_13 = arith.constant 0.000000e+00 : f32
    %48 = vector.broadcast %cst_13 : f32 to vector<16x128xf32>
    %49 = arith.cmpf one, %22, %48 : vector<16x128xf32>
    %50 = arith.extui %49 : vector<16x128xi1> to vector<16x128xi32>
    %51 = arith.sitofp %50 : vector<16x128xi32> to vector<16x128xf32>
    %c0_14 = arith.constant 0 : index
    %c0_15 = arith.constant 0 : index
    %c0_16 = arith.constant 0 : index
    %c0_17 = arith.constant 0 : index
    %52 = vector.load %arg4[%c0_14, %c0_15, %c0_16, %c0_17] : memref<1x3x8x128xf32, #tpu.memory_space<vmem>>, vector<1x1x8x128xf32>
    %53 = vector.shape_cast %52 : vector<1x1x8x128xf32> to vector<8x128xf32>
    %54 = vector.shape_cast %44 : vector<16x128xf32> to vector<2x8x128xf32>
    %cst_18 = arith.constant dense<0.000000e+00> : vector<8x128xf32>
    %55 = vector.multi_reduction <add>, %54, %cst_18 [0] : vector<2x8x128xf32> to vector<8x128xf32>
    %56 = arith.addf %53, %55 : vector<8x128xf32>
    %c0_19 = arith.constant 0 : index
    %c0_20 = arith.constant 0 : index
    %c0_21 = arith.constant 0 : index
    %c0_22 = arith.constant 0 : index
    %57 = vector.load %arg4[%c0_19, %c0_20, %c0_21, %c0_22] : memref<1x3x8x128xf32, #tpu.memory_space<vmem>>, vector<1x1x8x128xf32>
    %58 = vector.shape_cast %57 : vector<1x1x8x128xf32> to vector<8x128xf32>
    %59 = vector.shape_cast %56 : vector<8x128xf32> to vector<1x1x8x128xf32>
    tpu.vector_store %arg4[%c0_19, %c0_20, %c0_21, %c0_22], %59 {strides = array<i32>} : memref<1x3x8x128xf32, #tpu.memory_space<vmem>>, vector<1x1x8x128xf32>,
    %c0_23 = arith.constant 0 : index
    %c1 = arith.constant 1 : index
    %c0_24 = arith.constant 0 : index
    %c0_25 = arith.constant 0 : index
    %60 = vector.load %arg4[%c0_23, %c1, %c0_24, %c0_25] : memref<1x3x8x128xf32, #tpu.memory_space<vmem>>, vector<1x1x8x128xf32>
    %61 = vector.shape_cast %60 : vector<1x1x8x128xf32> to vector<8x128xf32>
    %62 = vector.shape_cast %47 : vector<16x128xf32> to vector<2x8x128xf32>
    %cst_26 = arith.constant dense<0.000000e+00> : vector<8x128xf32>
    %63 = vector.multi_reduction <add>, %62, %cst_26 [0] : vector<2x8x128xf32> to vector<8x128xf32>
    %64 = arith.addf %61, %63 : vector<8x128xf32>
    %c0_27 = arith.constant 0 : index
    %c1_28 = arith.constant 1 : index
    %c0_29 = arith.constant 0 : index
    %c0_30 = arith.constant 0 : index
    %65 = vector.load %arg4[%c0_27, %c1_28, %c0_29, %c0_30] : memref<1x3x8x128xf32, #tpu.memory_space<vmem>>, vector<1x1x8x128xf32>
    %66 = vector.shape_cast %65 : vector<1x1x8x128xf32> to vector<8x128xf32>
    %67 = vector.shape_cast %64 : vector<8x128xf32> to vector<1x1x8x128xf32>
    tpu.vector_store %arg4[%c0_27, %c1_28, %c0_29, %c0_30], %67 {strides = array<i32>} : memref<1x3x8x128xf32, #tpu.memory_space<vmem>>, vector<1x1x8x128xf32>,
    %c0_31 = arith.constant 0 : index
    %c2 = arith.constant 2 : index
    %c0_32 = arith.constant 0 : index
    %c0_33 = arith.constant 0 : index
    %68 = vector.load %arg4[%c0_31, %c2, %c0_32, %c0_33] : memref<1x3x8x128xf32, #tpu.memory_space<vmem>>, vector<1x1x8x128xf32>
    %69 = vector.shape_cast %68 : vector<1x1x8x128xf32> to vector<8x128xf32>
    %70 = vector.shape_cast %51 : vector<16x128xf32> to vector<2x8x128xf32>
    %cst_34 = arith.constant dense<0.000000e+00> : vector<8x128xf32>
    %71 = vector.multi_reduction <add>, %70, %cst_34 [0] : vector<2x8x128xf32> to vector<8x128xf32>
    %72 = arith.addf %69, %71 : vector<8x128xf32>
    %c0_35 = arith.constant 0 : index
    %c2_36 = arith.constant 2 : index
    %c0_37 = arith.constant 0 : index
    %c0_38 = arith.constant 0 : index
    %73 = vector.load %arg4[%c0_35, %c2_36, %c0_37, %c0_38] : memref<1x3x8x128xf32, #tpu.memory_space<vmem>>, vector<1x1x8x128xf32>
    %74 = vector.shape_cast %73 : vector<1x1x8x128xf32> to vector<8x128xf32>
    %75 = vector.shape_cast %72 : vector<8x128xf32> to vector<1x1x8x128xf32>
    tpu.vector_store %arg4[%c0_35, %c2_36, %c0_37, %c0_38], %75 {strides = array<i32>} : memref<1x3x8x128xf32, #tpu.memory_space<vmem>>, vector<1x1x8x128xf32>,
    return
  }
  func.func @transform_0(%arg0: i32, %arg1: i32) -> (i32, i32) {
    %c1_i32 = arith.constant 1 : i32
    %0 = arith.muli %arg0, %c1_i32 : i32
    %1 = arith.addi %0, %arg1 : i32
    %c0_i32 = arith.constant 0 : i32
    %2 = arith.minsi %1, %c0_i32 : i32
    %c0_i32_0 = arith.constant 0 : i32
    %c0_i32_1 = arith.constant 0 : i32
    return %2, %c0_i32_0 : i32, i32
  }
  func.func @transform_1(%arg0: i32, %arg1: i32) -> (i32, i32) {
    %c1_i32 = arith.constant 1 : i32
    %0 = arith.muli %arg0, %c1_i32 : i32
    %1 = arith.addi %0, %arg1 : i32
    %c0_i32 = arith.constant 0 : i32
    %2 = arith.minsi %1, %c0_i32 : i32
    %c0_i32_0 = arith.constant 0 : i32
    %c0_i32_1 = arith.constant 0 : i32
    return %2, %c0_i32_0 : i32, i32
  }
  func.func @transform_2(%arg0: i32, %arg1: i32) -> (i32, i32, i32, i32) {
    %c0_i32 = arith.constant 0 : i32
    %c0_i32_0 = arith.constant 0 : i32
    %c0_i32_1 = arith.constant 0 : i32
    %c0_i32_2 = arith.constant 0 : i32
    return %arg0, %c0_i32, %c0_i32_0, %c0_i32_1 : i32, i32, i32, i32
  }
}

</mosaic_0001>

<llo_original>
// kernel: tpu_custom_call.1
$region0: #{tpu_custom_call.1}
  #allocation0 [shape = 'u32[]', space=smem, size = 0x4, offset = 0x4, fixed_abs, tag = 'smem constant byte address 0x4 - core index']
  #allocation1 [shape = 'u32[144,128]{1,0:T(1,128)}', space=vmem, size = 0x12000, scoped, tag = 'internal scratch']
  %s0 = inlined_call_operand.hbm [shape: f32[16,128], index: 0, kind: input, shape index: {}]
  %s1 = inlined_call_operand.hbm [shape: f32[16,128], index: 1, kind: input, shape index: {}]
  %s2 = inlined_call_operand.hbm [shape: f32[1,3,8,128], index: 2, kind: output, shape index: {}]
  %s3 = sld [smem:[#allocation0]]
  $region30: #{tpu_custom_call.1} parent=0
    _
  %s5 = ssub.s32 1, %s3
  %s6 = scalar_select 0, %s5, %s3
  $region1: #{tpu_custom_call.1} parent=0
    #allocation2 [shape = 'u8[8192]{0}', space=vmem, size = 0x2000, scoped, tag = 'input window, operand 0, single buffered']
    #allocation3 [shape = 's32[1]{0}', space=sflag, size = 0x4, scoped, tag = 'scoped memory for tpu_custom_call.1']
    #allocation4 [shape = 's32[1]{0}', space=sflag, size = 0x4, scoped, tag = 'scoped memory for tpu_custom_call.1']
    #allocation5 [shape = 'u8[8192]{0}', space=vmem, size = 0x2000, scoped, tag = 'input window, operand 1, single buffered']
    #allocation6 [shape = 's32[1]{0}', space=sflag, size = 0x4, scoped, tag = 'scoped memory for tpu_custom_call.1']
    #allocation7 [shape = 'u8[12288]{0}', space=vmem, size = 0x3000, scoped, tag = 'output window, operand 0, single buffered']
    %7 = vsyncpa [#allocation3], 0
    %8 = vsyncpa [#allocation6], 0
    %9 = vsyncpa [#allocation4], 0
    // Predicated region
    $region2: #{tpu_custom_call.1} parent=1 // pred_check
      _
    $region3: #{tpu_custom_call.1} parent=1 // pred_check_branch
      %11 = sbr.rel (0) target = $region5
    $region4: #{tpu_custom_call.1} parent=1 // pred_region
      %s12 = sadd.s32 0, 0
      %p13 = scmp.lt.s32.totalorder %s12, 0
      %s14 = scalar_select %p13, %s12, 0
      %s15 = smul.u32 2, %s14
      %s17 = ssub.s32 256, 256
      %18 = vsyncadd [#allocation3], %s17
      %s19 = smul.addr %s15, 128
      %s20 = scalar_lea.hbm %s0, %s19
      %s21 = sshll.u32 [#allocation2], 4
      %s22 = int_to_ptr.vmem [resolvable:$true] %s21
      %27 = dma.hbm_to_vmem [thread:$0]  %s20, 256, %s22, [#allocation3], 128, 128, 8
    $region5: #{tpu_custom_call.1} parent=1 // pred_fallthru
      _
    // Predicated region
    $region6: #{tpu_custom_call.1} parent=1 // pred_check
      _
    $region7: #{tpu_custom_call.1} parent=1 // pred_check_branch
      %29 = sbr.rel (0) target = $region9
    $region8: #{tpu_custom_call.1} parent=1 // pred_region
      %s30 = sadd.s32 0, 0
      %p31 = scmp.lt.s32.totalorder %s30, 0
      %s32 = scalar_select %p31, %s30, 0
      %s33 = smul.u32 2, %s32
      %s35 = ssub.s32 256, 256
      %36 = vsyncadd [#allocation6], %s35
      %s37 = smul.addr %s33, 128
      %s38 = scalar_lea.hbm %s1, %s37
      %s39 = sshll.u32 [#allocation5], 4
      %s40 = int_to_ptr.vmem [resolvable:$true] %s39
      %45 = dma.hbm_to_vmem [thread:$0]  %s38, 256, %s40, [#allocation6], 128, 128, 8
    $region9: #{tpu_custom_call.1} parent=1 // pred_fallthru
      _
    // Predicated region
    $region10: #{tpu_custom_call.1} parent=1 // pred_check
      _
    $region11: #{tpu_custom_call.1} parent=1 // pred_check_branch
      %47 = sbr.rel (0) target = $region13
    $region12: #{tpu_custom_call.1} parent=1 // pred_region
      %48 = dma.done [#allocation3], 256
    $region13: #{tpu_custom_call.1} parent=1 // pred_fallthru
      _
    // Predicated region
    $region14: #{tpu_custom_call.1} parent=1 // pred_check
      _
    $region15: #{tpu_custom_call.1} parent=1 // pred_check_branch
      %50 = sbr.rel (0) target = $region17
    $region16: #{tpu_custom_call.1} parent=1 // pred_region
      %51 = dma.done [#allocation6], 256
    $region17: #{tpu_custom_call.1} parent=1 // pred_fallthru
      _
    %s52 = sadd.s32 0, 0
    %p53 = scmp.lt.s32.totalorder %s52, 0
    %s54 = scalar_select %p53, %s52, 0
    %s55 = smul.u32 2, %s54
    %s56 = sadd.s32 0, 0
    %p57 = scmp.lt.s32.totalorder %s56, 0
    %s58 = scalar_select %p57, %s56, 0
    %s59 = smul.u32 2, %s58
    %p60 = scmp.eq.s32.totalorder 0, 0
    // Predicated region
    $region18: #{tpu_custom_call.1} parent=1 // pred_check
      %p61 = pneg %p60
    $region19: #{tpu_custom_call.1} parent=1 // pred_check_branch
      %63 = sbr.rel (%p61) target = $region21
    $region20: #{tpu_custom_call.1} parent=1 // pred_region
      %64 = vst [vmem:[#allocation7] sm:$0xff] 0.0
      %65 = vst [vmem:[#allocation7 + $0x8] sm:$0xff] 0.0
      %66 = vst [vmem:[#allocation7 + $0x10] sm:$0xff] 0.0
    $region21: #{tpu_custom_call.1} parent=1 // pred_fallthru
      _
    %s67 = sadd.s32 0, 0
    %s68 = smul.u32 %s67, 2048
    %v69 = vlaneseq
    %v70 = vshrl.u32 %v69, 7
    %v71 = vadd.s32 %v70, 8
    %v72 = vlaneseq
    %v73 = vand.u32 %v72, 127
    %v74 = vmul.u32 %v70, 128
    %v75 = vmul.u32 %v71, 128
    %v76 = vstv %s68
    %v77 = vadd.s32 %v76, %v74
    %v78 = vadd.s32 %v76, %v75
    %v79 = vadd.s32 %v77, %v73
    %v80 = vadd.s32 %v78, %v73
    %vm81 = vcmp.lt.s32.totalorder %v79, 2048
    %vm82 = vcmp.lt.s32.totalorder %v80, 2048
    %v83 = vsel %vm81, 1, 0
    %v84 = vsel %vm82, 1, 0
    %v85 = vcvt.s32.f32 %v83
    %v86 = vcvt.s32.f32 %v84
    %v87 = vld [vmem:[#allocation2] sm:$0xff]
    %v88 = vld [vmem:[#allocation2 + $0x8] sm:$0xff]
    %v89 = vsel %vm81, %v87, 0.5
    %v90 = vsel %vm82, %v88, 0.5
    %v91 = vld [vmem:[#allocation5] sm:$0xff]
    %v92 = vld [vmem:[#allocation5 + $0x8] sm:$0xff]
    %v93 = vsel %vm81, %v91, 0.0
    %v94 = vsel %vm82, %v92, 0.0
    %v95 = vmax.f32 %v89, 1e-06
    %v96 = vmax.f32 %v90, 1e-06
    %v97 = vmin.f32 %v95, 0.999999
    %v98 = vmin.f32 %v96, 0.999999
    %v99 = vlog2.pop %v97
    %v100 = vmul.f32 %v99, 0.6931472
    %v101 = vlog2.pop %v98
    %v102 = vmul.f32 %v101, 0.6931472
    %v103 = vsub.f32 1.0, %v97
    %v104 = vsub.f32 1.0, %v98
    %v105 = vlog2.pop %v103
    %v106 = vmul.f32 %v105, 0.6931472
    %v107 = vlog2.pop %v104
    %v108 = vmul.f32 %v107, 0.6931472
    %v109 = vrsqrt.pop %v103
    %v110 = vmul.f32 %v103, %v109
    %vm111 = vcmp.eq.f32.partialorder %v103, inf
    %v112 = vsel %vm111, %v103, %v110
    %vm113 = vcmp.eq.f32.partialorder %v103, 0.0
    %v114 = vand.u32 %v103, 2147483648
    %v115 = vsel %vm113, %v114, %v112
    %v116 = vrsqrt.pop %v104
    %v117 = vmul.f32 %v104, %v116
    %vm118 = vcmp.eq.f32.partialorder %v104, inf
    %v119 = vsel %vm118, %v104, %v117
    %vm120 = vcmp.eq.f32.partialorder %v104, 0.0
    %v121 = vand.u32 %v104, 2147483648
    %v122 = vsel %vm120, %v121, %v119
    %v123 = vrsqrt.pop %v97
    %v124 = vmul.f32 %v97, %v123
    %vm125 = vcmp.eq.f32.partialorder %v97, inf
    %v126 = vsel %vm125, %v97, %v124
    %vm127 = vcmp.eq.f32.partialorder %v97, 0.0
    %v128 = vand.u32 %v97, 2147483648
    %v129 = vsel %vm127, %v128, %v126
    %v130 = vrsqrt.pop %v98
    %v131 = vmul.f32 %v98, %v130
    %vm132 = vcmp.eq.f32.partialorder %v98, inf
    %v133 = vsel %vm132, %v98, %v131
    %vm134 = vcmp.eq.f32.partialorder %v98, 0.0
    %v135 = vand.u32 %v98, 2147483648
    %v136 = vsel %vm134, %v135, %v133
    %v137 = vmul.f32 %v115, 1.3862944
    %v138 = vmul.f32 %v122, 1.3862944
    %v139 = vmul.f32 %v137, 1.442695
    %v140 = vpow.pop %v139
    %v141 = vmul.f32 %v138, 1.442695
    %v142 = vpow.pop %v141
    %v143 = vmul.f32 %v129, 1.3862944
    %v144 = vmul.f32 %v136, 1.3862944
    %v145 = vmul.f32 %v143, 1.442695
    %v146 = vpow.pop %v145
    %v147 = vmul.f32 %v144, 1.442695
    %v148 = vpow.pop %v147
    %v149 = vsub.f32 0.0, %v140
    %v150 = vsub.f32 0.0, %v142
    %v151 = vmul.f32 %v93, %v149
    %v152 = vmul.f32 %v94, %v150
    %v153 = vmul.f32 %v151, %v100
    %v154 = vmul.f32 %v152, %v102
    %v155 = vsub.f32 %v93, %v85
    %v156 = vsub.f32 %v94, %v86
    %v157 = vmul.f32 %v155, %v146
    %v158 = vmul.f32 %v156, %v148
    %v159 = vmul.f32 %v157, %v106
    %v160 = vmul.f32 %v158, %v108
    %vm161 = vcmp.ne.f32.partialorder %v93, 0.0
    %vm162 = vcmp.ne.f32.partialorder %v94, 0.0
    %v163 = vsel %vm161, 1, 0
    %v164 = vsel %vm162, 1, 0
    %v165 = vcvt.s32.f32 %v163
    %v166 = vcvt.s32.f32 %v164
    %v167 = vld [vmem:[#allocation7] sm:$0xff]
    %v168 = vadd.f32 %v153, %v154
    %v169 = vadd.f32 %v167, %v168
    %170 = vst [vmem:[#allocation7] sm:$0xff] %v169
    %s171 = scalar_lea.vmem [#allocation7], 8
    %v172 = vld [vmem:[%s171] sm:$0xff]
    %v173 = vadd.f32 %v159, %v160
    %v174 = vadd.f32 %v172, %v173
    %175 = vst [vmem:[%s171] sm:$0xff] %v174
    %s176 = scalar_lea.vmem [#allocation7], 16
    %v177 = vld [vmem:[%s176] sm:$0xff]
    %v178 = vadd.f32 %v165, %v166
    %v179 = vadd.f32 %v177, %v178
    %180 = vst [vmem:[%s176] sm:$0xff] %v179
    // Predicated region
    $region22: #{tpu_custom_call.1} parent=1 // pred_check
      _
    $region23: #{tpu_custom_call.1} parent=1 // pred_check_branch
      %182 = sbr.rel (0) target = $region25
    $region24: #{tpu_custom_call.1} parent=1 // pred_region
      %s184 = ssub.s32 384, 384
      %185 = vsyncadd [#allocation4], %s184
      %s186 = sshll.u32 [#allocation7], 4
      %s187 = int_to_ptr.vmem [resolvable:$true] %s186
      %192 = dma.vmem_to_hbm [thread:$0]  %s187, 384, %s2, [#allocation4], 128, 128, 8
    $region25: #{tpu_custom_call.1} parent=1 // pred_fallthru
      _
    // Predicated region
    $region26: #{tpu_custom_call.1} parent=1 // pred_check
      _
    $region27: #{tpu_custom_call.1} parent=1 // pred_check_branch
      %194 = sbr.rel (0) target = $region29
    $region28: #{tpu_custom_call.1} parent=1 // pred_region
      %195 = dma.done [#allocation4], 384
    $region29: #{tpu_custom_call.1} parent=1 // pred_fallthru
      _
    %196 = vsyncpa [#allocation3], 1
    %197 = vsyncpa [#allocation6], 1
    %198 = vsyncpa [#allocation4], 1

</llo_original>
